<compile_context>
chip_gen: v5e
topology: v5e:2x2
jax: 0.10.0
libtpu: 0.0.40
codegen_flags: <defaults>
</compile_context>

<pallas_src>
import functools

import jax
import jax.numpy as jnp
from jax.experimental import pallas as pl
from jax.experimental.pallas import tpu as pltpu

D = 4                     # board dimension -> 16 input features
IN = D * D
H1, H2, OUT = 64, 128, 4
OUT_PAD = 128             # lane-dense padded head width
EPS = 1e-5                # nn.BatchNorm1d default eps
SLOPE = 0.05              # LeakyReLU negative_slope
MATMUL_DTYPE = jnp.bfloat16   # MXU-native on v6e/v7x; f32 accumulation


def _round_up(n, m):
    return ((n + m - 1) // m) * m


def _leaky(v):
    return jnp.where(v >= 0.0, v, SLOPE * v)


def _dot(a_f32, w_ref):
    # bf16 MXU inputs, f32 accumulate.  Elementwise math stays f32.
    return jnp.dot(a_f32.astype(MATMUL_DTYPE), w_ref[...],
                   preferred_element_type=jnp.float32)


def _bn_apply(v, sum_ref, sq_ref, inv_n, gamma, beta):
    # training-mode BN with biased batch stats, var = E[x^2] - mean^2
    mean = sum_ref[...] * inv_n
    var = jnp.maximum(sq_ref[...] * inv_n - mean * mean, 0.0)
    return (v - mean) * jax.lax.rsqrt(var + EPS) * gamma + beta


def qnet_kernel(x_ref,
                w1_ref, b1_ref, g1_ref, be1_ref,
                w2_ref, b2_ref, g2_ref, be2_ref,
                w3_ref, b3_ref,
                out_ref,
                sum1_ref, sq1_ref, sum2_ref, sq2_ref,
                *, batch, tile_b):
    phase = pl.program_id(0)   # 0: BN1 stats, 1: BN2 stats, 2: emit output
    tile = pl.program_id(1)    # batch tile

    @pl.when(jnp.logical_and(phase == 0, tile == 0))
    def _init_stats():
        sum1_ref[...] = jnp.zeros_like(sum1_ref)
        sq1_ref[...] = jnp.zeros_like(sq1_ref)
        sum2_ref[...] = jnp.zeros_like(sum2_ref)
        sq2_ref[...] = jnp.zeros_like(sq2_ref)

    inv_n = jnp.float32(1.0 / batch)

    # rows of this tile that belong to the real (unpadded) batch
    row = jax.lax.broadcasted_iota(jnp.int32, (tile_b, 1), 0) + tile * tile_b
    valid = (row < batch).astype(jnp.float32)              # (TB, 1)

    # preprocess: log2 with log2(0) -> 0 (mask operand to avoid -inf)
    x = x_ref[...]                                          # (TB, 16) f32
    logx = jnp.where(x > 0.0, jnp.log2(jnp.where(x > 0.0, x, 1.0)), 0.0)

    # layer 1 pre-BN is needed in every phase
    h1 = _leaky(_dot(logx, w1_ref) + b1_ref[...])           # (TB, 64) f32

    def bn1(v):
        return _bn_apply(v, sum1_ref, sq1_ref, inv_n, g1_ref[...], be1_ref[...])

    def bn2(v):
        return _bn_apply(v, sum2_ref, sq2_ref, inv_n, g2_ref[...], be2_ref[...])

    @pl.when(phase == 0)
    def _accumulate_bn1():
        vm = h1 * valid
        sum1_ref[...] += jnp.sum(vm, axis=0, keepdims=True)
        sq1_ref[...] += jnp.sum(vm * vm, axis=0, keepdims=True)

    @pl.when(phase == 1)
    def _accumulate_bn2():
        h2 = _leaky(_dot(bn1(h1), w2_ref) + b2_ref[...])    # (TB, 128) f32
        vm = h2 * valid
        sum2_ref[...] += jnp.sum(vm, axis=0, keepdims=True)
        sq2_ref[...] += jnp.sum(vm * vm, axis=0, keepdims=True)

    @pl.when(phase == 2)
    def _emit():
        h2 = _leaky(_dot(bn1(h1), w2_ref) + b2_ref[...])
        q = _leaky(_dot(bn2(h2), w3_ref) + b3_ref[...])     # (TB, 128) lane-dense
        out_ref[...] = jnp.exp2(q) - 1.0


def qnet_forward(x, params, *, tile_b=512):
    """x: (B, D, D) float32 board states (tiles are 0 or powers of two)."""
    B = x.shape[0]
    x_flat = x.reshape(B, IN).astype(jnp.float32)

    tb = min(tile_b, _round_up(B, 8))
    b_pad = _round_up(B, tb)
    if b_pad != B:
        x_flat = jnp.pad(x_flat, ((0, b_pad - B), (0, 0)))
    n_tiles = b_pad // tb

    # lane-dense head: zero-pad the 4-wide output layer to 128 columns
    w3p = jnp.zeros((H2, OUT_PAD), MATMUL_DTYPE)
    w3p = w3p.at[:, :OUT].set(params["w3"].astype(MATMUL_DTYPE))
    b3p = jnp.zeros((1, OUT_PAD), jnp.float32).at[:, :OUT].set(params["b3"])

    args = (x_flat,
            params["w1"].astype(MATMUL_DTYPE), params["b1"], params["g1"], params["be1"],
            params["w2"].astype(MATMUL_DTYPE), params["b2"], params["g2"], params["be2"],
            w3p, b3p)

    # weights / BN params: grid-invariant index maps -> resident in VMEM
    def const_spec(shape):
        return pl.BlockSpec(shape, lambda p, t: (0, 0))

    in_specs = [
        pl.BlockSpec((tb, IN), lambda p, t: (t, 0)),        # x batch tile
        const_spec((IN, H1)), const_spec((1, H1)), const_spec((1, H1)), const_spec((1, H1)),
        const_spec((H1, H2)), const_spec((1, H2)), const_spec((1, H2)), const_spec((1, H2)),
        const_spec((H2, OUT_PAD)), const_spec((1, OUT_PAD)),
    ]
    # Output block only advances during the emit phase (phase 2); during the
    # stats phases it stays pinned at block 0, so each tile is copied out to
    # HBM exactly once, after it has been written.
    out_specs = pl.BlockSpec((tb, OUT_PAD),
                             lambda p, t: (jnp.where(p == 2, t, 0), 0))

    # explicit VMEM budget from the working set (double-buffered tiles +
    # resident weights + activation temporaries), clamped to a safe range
    work = (2 * tb * IN * 4 + 2 * tb * OUT_PAD * 4
            + 2 * tb * (H1 + H2 + OUT_PAD) * 4
            + (IN * H1 + H1 * H2 + H2 * OUT_PAD) * 2
            + 64 * 1024)
    vmem_bytes = int(min(max(4 * work, 8 << 20), 32 << 20))

    kern = functools.partial(qnet_kernel, batch=B, tile_b=tb)
    out = pl.pallas_call(
        kern,
        out_shape=jax.ShapeDtypeStruct((b_pad, OUT_PAD), jnp.float32),
        grid_spec=pltpu.PrefetchScalarGridSpec(
            num_scalar_prefetch=0,
            grid=(3, n_tiles),                   # (phase, batch-tile)
            in_specs=in_specs,
            out_specs=out_specs,
            scratch_shapes=[pltpu.VMEM((1, H1), jnp.float32),   # BN1 sum
                            pltpu.VMEM((1, H1), jnp.float32),   # BN1 sum-sq
                            pltpu.VMEM((1, H2), jnp.float32),   # BN2 sum
                            pltpu.VMEM((1, H2), jnp.float32)]), # BN2 sum-sq
        compiler_params=pltpu.CompilerParams(
            # phases are sequential; batch tiles accumulate into shared
            # scratch, so both axes are "arbitrary"
            dimension_semantics=("arbitrary", "arbitrary"),
            vmem_limit_bytes=vmem_bytes),
    )(*args)
    return out[:B, :OUT]


def init_params(key):
    """Deterministic synthetic init (PyTorch-style uniform +/- 1/sqrt(fan_in))."""
    ks = jax.random.split(key, 6)

    def lin(kw, kb, fan_in, fan_out):
        bound = 1.0 / jnp.sqrt(float(fan_in))
        w = jax.random.uniform(kw, (fan_in, fan_out), jnp.float32, -bound, bound)
        b = jax.random.uniform(kb, (1, fan_out), jnp.float32, -bound, bound)
        return w, b

    w1, b1 = lin(ks[0], ks[1], IN, H1)
    w2, b2 = lin(ks[2], ks[3], H1, H2)
    w3, b3 = lin(ks[4], ks[5], H2, OUT)
    return dict(
        w1=w1, b1=b1, g1=jnp.ones((1, H1), jnp.float32), be1=jnp.zeros((1, H1), jnp.float32),
        w2=w2, b2=b2, g2=jnp.ones((1, H2), jnp.float32), be2=jnp.zeros((1, H2), jnp.float32),
        w3=w3, b3=b3,
    )


def qnet_reference(x, params, *, quantize=True):
    """Pure-JAX reference.  quantize=True mirrors the kernel's bf16 MXU inputs
    (f32 accumulation); quantize=False is the exact f32 PyTorch semantics."""
    B = x.shape[0]
    xf = x.reshape(B, IN).astype(jnp.float32)
    logx = jnp.where(xf > 0, jnp.log2(jnp.where(xf > 0, xf, 1.0)), 0.0)

    def mm(a, w):
        if quantize:
            a = a.astype(MATMUL_DTYPE).astype(jnp.float32)
            w = w.astype(MATMUL_DTYPE).astype(jnp.float32)
        return jnp.dot(a, w, preferred_element_type=jnp.float32)

    def bn(v, g, b):
        mu = v.mean(0, keepdims=True)
        var = ((v - mu) ** 2).mean(0, keepdims=True)
        return (v - mu) / jnp.sqrt(var + EPS) * g + b

    h1 = bn(_leaky(mm(logx, params["w1"]) + params["b1"]), params["g1"], params["be1"])
    h2 = bn(_leaky(mm(h1, params["w2"]) + params["b2"]), params["g2"], params["be2"])
    q = _leaky(mm(h2, params["w3"]) + params["b3"])
    return jnp.exp2(q) - 1.0


if __name__ == "__main__":
    key = jax.random.PRNGKey(0)
    k_param, k_data, k_data2 = jax.random.split(key, 3)

    params = init_params(k_param)

    # 2048-style boards: tiles are 0 or powers of two.
    B = 8
    exps = jax.random.randint(k_data, (B, D, D), 0, 7)
    x = jnp.where(exps == 0, 0.0, jnp.exp2(exps.astype(jnp.float32)))

    out = qnet_forward(x, params)
    out = jax.block_until_ready(out)
    assert out.shape == (B, OUT)
    assert bool(jnp.all(jnp.isfinite(out)))

    ref_q = qnet_reference(x, params, quantize=True)      # mirrors bf16 matmuls
    ref_f = qnet_reference(x, params, quantize=False)     # exact f32 semantics
    assert jnp.allclose(out, ref_q, rtol=5e-3, atol=5e-3), "mismatch vs reference"
    assert jnp.allclose(out, ref_f, rtol=1e-1, atol=1e-1), "semantic drift vs f32 reference"

    # second config: batch not a multiple of the tile -> multi-tile grid,
    # cross-tile BatchNorm accumulation and row masking are exercised.
    B2 = 40
    exps2 = jax.random.randint(k_data2, (B2, D, D), 0, 7)
    x2 = jnp.where(exps2 == 0, 0.0, jnp.exp2(exps2.astype(jnp.float32)))
    out2 = jax.block_until_ready(qnet_forward(x2, params, tile_b=16))
    ref2 = qnet_reference(x2, params, quantize=True)
    assert out2.shape == (B2, OUT)
    assert jnp.allclose(out2, ref2, rtol=5e-3, atol=5e-3), "mismatch vs reference (tiled)"

    print("KERNEL_OK")
</pallas_src>

<mosaic_0001>
module attributes {stable_mosaic.version = 11 : i64} {
  func.func @qnet_kernel(%arg0: i32, %arg1: i32, %arg2: memref<8x16xf32, #tpu.memory_space<vmem>>, %arg3: memref<16x64xbf16, #tpu.memory_space<vmem>>, %arg4: memref<1x64xf32, #tpu.memory_space<vmem>>, %arg5: memref<1x64xf32, #tpu.memory_space<vmem>>, %arg6: memref<1x64xf32, #tpu.memory_space<vmem>>, %arg7: memref<64x128xbf16, #tpu.memory_space<vmem>>, %arg8: memref<1x128xf32, #tpu.memory_space<vmem>>, %arg9: memref<1x128xf32, #tpu.memory_space<vmem>>, %arg10: memref<1x128xf32, #tpu.memory_space<vmem>>, %arg11: memref<128x128xbf16, #tpu.memory_space<vmem>>, %arg12: memref<1x128xf32, #tpu.memory_space<vmem>>, %arg13: memref<8x128xf32, #tpu.memory_space<vmem>>, %arg14: memref<1x64xf32, #tpu.memory_space<vmem>>, %arg15: memref<1x64xf32, #tpu.memory_space<vmem>>, %arg16: memref<1x128xf32, #tpu.memory_space<vmem>>, %arg17: memref<1x128xf32, #tpu.memory_space<vmem>>) attributes {dimension_semantics = [#tpu.dimension_semantics<arbitrary>, #tpu.dimension_semantics<arbitrary>], iteration_bounds = array<i64: 3, 1>, scalar_prefetch = 0 : i64, scratch_operands = 4 : i64, tpu.core_type = #tpu.core_type<tc>, window_params = [{transform_indices = @transform_0, window_bounds = array<i64: 8, 16>}, {pipeline_mode = #tpu.pipeline_mode<synchronous>, transform_indices = @transform_1, window_bounds = array<i64: 16, 64>}, {pipeline_mode = #tpu.pipeline_mode<synchronous>, transform_indices = @transform_2, window_bounds = array<i64: 1, 64>}, {pipeline_mode = #tpu.pipeline_mode<synchronous>, transform_indices = @transform_3, window_bounds = array<i64: 1, 64>}, {pipeline_mode = #tpu.pipeline_mode<synchronous>, transform_indices = @transform_4, window_bounds = array<i64: 1, 64>}, {pipeline_mode = #tpu.pipeline_mode<synchronous>, transform_indices = @transform_5, window_bounds = array<i64: 64, 128>}, {pipeline_mode = #tpu.pipeline_mode<synchronous>, transform_indices = @transform_6, window_bounds = array<i64: 1, 128>}, {pipeline_mode = #tpu.pipeline_mode<synchronous>, transform_indices = @transform_7, window_bounds = array<i64: 1, 128>}, {pipeline_mode = #tpu.pipeline_mode<synchronous>, transform_indices = @transform_8, window_bounds = array<i64: 1, 128>}, {pipeline_mode = #tpu.pipeline_mode<synchronous>, transform_indices = @transform_9, window_bounds = array<i64: 128, 128>}, {pipeline_mode = #tpu.pipeline_mode<synchronous>, transform_indices = @transform_10, window_bounds = array<i64: 1, 128>}, {transform_indices = @transform_11, window_bounds = array<i64: 8, 128>}]} {
    %c0_i32 = arith.constant 0 : i32
    %0 = arith.cmpi eq, %arg0, %c0_i32 : i32
    %c0_i32_0 = arith.constant 0 : i32
    %1 = arith.cmpi eq, %arg1, %c0_i32_0 : i32
    %2 = arith.andi %0, %1 : i1
    %3 = arith.extui %2 : i1 to i32
    %c0_i32_1 = arith.constant 0 : i32
    %4 = arith.cmpi ne, %3, %c0_i32_1 : i32
    scf.if %4 {
      %cst_21 = arith.constant 0.000000e+00 : f32
      %46 = vector.broadcast %cst_21 : f32 to vector<1x64xf32>
      %c0_22 = arith.constant 0 : index
      %c0_23 = arith.constant 0 : index
      %47 = vector.load %arg14[%c0_22, %c0_23] : memref<1x64xf32, #tpu.memory_space<vmem>>, vector<1x64xf32>
      tpu.vector_store %arg14[%c0_22, %c0_23], %46 {strides = array<i32>} : memref<1x64xf32, #tpu.memory_space<vmem>>, vector<1x64xf32>,
      %cst_24 = arith.constant 0.000000e+00 : f32
      %48 = vector.broadcast %cst_24 : f32 to vector<1x64xf32>
      %c0_25 = arith.constant 0 : index
      %c0_26 = arith.constant 0 : index
      %49 = vector.load %arg15[%c0_25, %c0_26] : memref<1x64xf32, #tpu.memory_space<vmem>>, vector<1x64xf32>
      tpu.vector_store %arg15[%c0_25, %c0_26], %48 {strides = array<i32>} : memref<1x64xf32, #tpu.memory_space<vmem>>, vector<1x64xf32>,
      %cst_27 = arith.constant 0.000000e+00 : f32
      %50 = vector.broadcast %cst_27 : f32 to vector<1x128xf32>
      %c0_28 = arith.constant 0 : index
      %c0_29 = arith.constant 0 : index
      %51 = vector.load %arg16[%c0_28, %c0_29] : memref<1x128xf32, #tpu.memory_space<vmem>>, vector<1x128xf32>
      tpu.vector_store %arg16[%c0_28, %c0_29], %50 {strides = array<i32>} : memref<1x128xf32, #tpu.memory_space<vmem>>, vector<1x128xf32>,
      %cst_30 = arith.constant 0.000000e+00 : f32
      %52 = vector.broadcast %cst_30 : f32 to vector<1x128xf32>
      %c0_31 = arith.constant 0 : index
      %c0_32 = arith.constant 0 : index
      %53 = vector.load %arg17[%c0_31, %c0_32] : memref<1x128xf32, #tpu.memory_space<vmem>>, vector<1x128xf32>
      tpu.vector_store %arg17[%c0_31, %c0_32], %52 {strides = array<i32>} : memref<1x128xf32, #tpu.memory_space<vmem>>, vector<1x128xf32>,
    } else {
    }
    %5 = tpu.iota {dimensions = array<i32: 0>} : vector<8x1xi32>
    %c8_i32 = arith.constant 8 : i32
    %6 = arith.muli %arg1, %c8_i32 : i32
    %7 = vector.broadcast %6 : i32 to vector<8x1xi32>
    %8 = arith.addi %5, %7 : vector<8x1xi32>
    %c8_i32_2 = arith.constant 8 : i32
    %9 = vector.broadcast %c8_i32_2 : i32 to vector<8x1xi32>
    %10 = arith.cmpi slt, %8, %9 : vector<8x1xi32>
    %11 = arith.extui %10 : vector<8x1xi1> to vector<8x1xi32>
    %12 = arith.sitofp %11 : vector<8x1xi32> to vector<8x1xf32>
    %c0 = arith.constant 0 : index
    %c0_3 = arith.constant 0 : index
    %13 = vector.load %arg2[%c0, %c0_3] : memref<8x16xf32, #tpu.memory_space<vmem>>, vector<8x16xf32>
    %cst = arith.constant 0.000000e+00 : f32
    %14 = vector.broadcast %cst : f32 to vector<8x16xf32>
    %15 = arith.cmpf ogt, %13, %14 : vector<8x16xf32>
    %cst_4 = arith.constant 0.000000e+00 : f32
    %16 = vector.broadcast %cst_4 : f32 to vector<8x16xf32>
    %17 = arith.cmpf ogt, %13, %16 : vector<8x16xf32>
    %cst_5 = arith.constant 1.000000e+00 : f32
    %18 = vector.broadcast %cst_5 : f32 to vector<8x16xf32>
    %19 = arith.select %17, %13, %18 : vector<8x16xi1>, vector<8x16xf32>
    %20 = math.log %19 : vector<8x16xf32>
    %cst_6 = arith.constant 2.000000e+00 : f32
    %21 = math.log %cst_6 : f32
    %22 = vector.broadcast %21 : f32 to vector<8x16xf32>
    %23 = arith.divf %20, %22 : vector<8x16xf32>
    %cst_7 = arith.constant 0.000000e+00 : f32
    %24 = vector.broadcast %cst_7 : f32 to vector<8x16xf32>
    %25 = arith.select %15, %23, %24 : vector<8x16xi1>, vector<8x16xf32>
    %26 = arith.truncf %25 : vector<8x16xf32> to vector<8x16xbf16>
    %c0_8 = arith.constant 0 : index
    %c0_9 = arith.constant 0 : index
    %27 = vector.load %arg3[%c0_8, %c0_9] : memref<16x64xbf16, #tpu.memory_space<vmem>>, vector<16x64xbf16>
    %cst_10 = arith.constant dense<0.000000e+00> : vector<8x64xf32>
    %28 = tpu.matmul %26, %27, %cst_10 {dimension_numbers = #tpu.dot_dimension_numbers<[1], [0], [0], [1], [0, 0, 1, 1], [], []>} : vector<8x16xbf16>, vector<16x64xbf16>, vector<8x64xf32> -> vector<8x64xf32>
    %c0_11 = arith.constant 0 : index
    %c0_12 = arith.constant 0 : index
    %29 = vector.load %arg4[%c0_11, %c0_12] : memref<1x64xf32, #tpu.memory_space<vmem>>, vector<1x64xf32>
    %30 = vector.broadcast %29 : vector<1x64xf32> to vector<8x64xf32>
    %31 = arith.addf %28, %30 : vector<8x64xf32>
    %cst_13 = arith.constant 0.000000e+00 : f32
    %32 = vector.broadcast %cst_13 : f32 to vector<8x64xf32>
    %33 = arith.cmpf oge, %31, %32 : vector<8x64xf32>
    %cst_14 = arith.constant 5.000000e-02 : f32
    %34 = vector.broadcast %cst_14 : f32 to vector<8x64xf32>
    %35 = arith.mulf %34, %31 : vector<8x64xf32>
    %36 = arith.select %33, %31, %35 : vector<8x64xi1>, vector<8x64xf32>
    %c0_i32_15 = arith.constant 0 : i32
    %37 = arith.cmpi eq, %arg0, %c0_i32_15 : i32
    %38 = arith.extui %37 : i1 to i32
    %c0_i32_16 = arith.constant 0 : i32
    %39 = arith.cmpi ne, %38, %c0_i32_16 : i32
    scf.if %39 {
      %46 = vector.broadcast %12 : vector<8x1xf32> to vector<8x64xf32>
      %47 = arith.mulf %36, %46 : vector<8x64xf32>
      %c0_21 = arith.constant 0 : index
      %c0_22 = arith.constant 0 : index
      %48 = vector.load %arg14[%c0_21, %c0_22] : memref<1x64xf32, #tpu.memory_space<vmem>>, vector<1x64xf32>
      %cst_23 = arith.constant dense<0.000000e+00> : vector<64xf32>
      %49 = vector.multi_reduction <add>, %47, %cst_23 [0] : vector<8x64xf32> to vector<64xf32>
      %50 = vector.shape_cast %49 : vector<64xf32> to vector<1x64xf32>
      %51 = arith.addf %48, %50 : vector<1x64xf32>
      %c0_24 = arith.constant 0 : index
      %c0_25 = arith.constant 0 : index
      %52 = vector.load %arg14[%c0_24, %c0_25] : memref<1x64xf32, #tpu.memory_space<vmem>>, vector<1x64xf32>
      tpu.vector_store %arg14[%c0_24, %c0_25], %51 {strides = array<i32>} : memref<1x64xf32, #tpu.memory_space<vmem>>, vector<1x64xf32>,
      %c0_26 = arith.constant 0 : index
      %c0_27 = arith.constant 0 : index
      %53 = vector.load %arg15[%c0_26, %c0_27] : memref<1x64xf32, #tpu.memory_space<vmem>>, vector<1x64xf32>
      %54 = arith.mulf %47, %47 : vector<8x64xf32>
      %cst_28 = arith.constant dense<0.000000e+00> : vector<64xf32>
      %55 = vector.multi_reduction <add>, %54, %cst_28 [0] : vector<8x64xf32> to vector<64xf32>
      %56 = vector.shape_cast %55 : vector<64xf32> to vector<1x64xf32>
      %57 = arith.addf %53, %56 : vector<1x64xf32>
      %c0_29 = arith.constant 0 : index
      %c0_30 = arith.constant 0 : index
      %58 = vector.load %arg15[%c0_29, %c0_30] : memref<1x64xf32, #tpu.memory_space<vmem>>, vector<1x64xf32>
      tpu.vector_store %arg15[%c0_29, %c0_30], %57 {strides = array<i32>} : memref<1x64xf32, #tpu.memory_space<vmem>>, vector<1x64xf32>,
    } else {
    }
    %c1_i32 = arith.constant 1 : i32
    %40 = arith.cmpi eq, %arg0, %c1_i32 : i32
    %41 = arith.extui %40 : i1 to i32
    %cst_17 = arith.constant 1.250000e-01 : f32
    %c0_i32_18 = arith.constant 0 : i32
    %42 = arith.cmpi ne, %41, %c0_i32_18 : i32
    scf.if %42 {
      %c0_21 = arith.constant 0 : index
      %c0_22 = arith.constant 0 : index
      %46 = vector.load %arg5[%c0_21, %c0_22] : memref<1x64xf32, #tpu.memory_space<vmem>>, vector<1x64xf32>
      %c0_23 = arith.constant 0 : index
      %c0_24 = arith.constant 0 : index
      %47 = vector.load %arg6[%c0_23, %c0_24] : memref<1x64xf32, #tpu.memory_space<vmem>>, vector<1x64xf32>
      %c0_25 = arith.constant 0 : index
      %c0_26 = arith.constant 0 : index
      %48 = vector.load %arg14[%c0_25, %c0_26] : memref<1x64xf32, #tpu.memory_space<vmem>>, vector<1x64xf32>
      %49 = vector.broadcast %cst_17 : f32 to vector<1x64xf32>
      %50 = arith.mulf %48, %49 : vector<1x64xf32>
      %c0_27 = arith.constant 0 : index
      %c0_28 = arith.constant 0 : index
      %51 = vector.load %arg15[%c0_27, %c0_28] : memref<1x64xf32, #tpu.memory_space<vmem>>, vector<1x64xf32>
      %52 = vector.broadcast %cst_17 : f32 to vector<1x64xf32>
      %53 = arith.mulf %51, %52 : vector<1x64xf32>
      %54 = arith.mulf %50, %50 : vector<1x64xf32>
      %55 = arith.subf %53, %54 : vector<1x64xf32>
      %cst_29 = arith.constant 0.000000e+00 : f32
      %56 = vector.broadcast %cst_29 : f32 to vector<1x64xf32>
      %57 = arith.maximumf %55, %56 : vector<1x64xf32>
      %58 = vector.broadcast %50 : vector<1x64xf32> to vector<8x64xf32>
      %59 = arith.subf %36, %58 : vector<8x64xf32>
      %cst_30 = arith.constant 9.99999974E-6 : f32
      %60 = vector.broadcast %cst_30 : f32 to vector<1x64xf32>
      %61 = arith.addf %57, %60 : vector<1x64xf32>
      %62 = math.rsqrt %61 : vector<1x64xf32>
      %63 = vector.broadcast %62 : vector<1x64xf32> to vector<8x64xf32>
      %64 = arith.mulf %59, %63 : vector<8x64xf32>
      %65 = vector.broadcast %46 : vector<1x64xf32> to vector<8x64xf32>
      %66 = arith.mulf %64, %65 : vector<8x64xf32>
      %67 = vector.broadcast %47 : vector<1x64xf32> to vector<8x64xf32>
      %68 = arith.addf %66, %67 : vector<8x64xf32>
      %69 = arith.truncf %68 : vector<8x64xf32> to vector<8x64xbf16>
      %c0_31 = arith.constant 0 : index
      %c0_32 = arith.constant 0 : index
      %70 = vector.load %arg7[%c0_31, %c0_32] : memref<64x128xbf16, #tpu.memory_space<vmem>>, vector<64x128xbf16>
      %cst_33 = arith.constant dense<0.000000e+00> : vector<8x128xf32>
      %71 = tpu.matmul %69, %70, %cst_33 {dimension_numbers = #tpu.dot_dimension_numbers<[1], [0], [0], [1], [0, 0, 1, 1], [], []>} : vector<8x64xbf16>, vector<64x128xbf16>, vector<8x128xf32> -> vector<8x128xf32>
      %c0_34 = arith.constant 0 : index
      %c0_35 = arith.constant 0 : index
      %72 = vector.load %arg8[%c0_34, %c0_35] : memref<1x128xf32, #tpu.memory_space<vmem>>, vector<1x128xf32>
      %73 = vector.broadcast %72 : vector<1x128xf32> to vector<8x128xf32>
      %74 = arith.addf %71, %73 : vector<8x128xf32>
      %cst_36 = arith.constant 0.000000e+00 : f32
      %75 = vector.broadcast %cst_36 : f32 to vector<8x128xf32>
      %76 = arith.cmpf oge, %74, %75 : vector<8x128xf32>
      %cst_37 = arith.constant 5.000000e-02 : f32
      %77 = vector.broadcast %cst_37 : f32 to vector<8x128xf32>
      %78 = arith.mulf %77, %74 : vector<8x128xf32>
      %79 = arith.select %76, %74, %78 : vector<8x128xi1>, vector<8x128xf32>
      %80 = vector.broadcast %12 : vector<8x1xf32> to vector<8x128xf32>
      %81 = arith.mulf %79, %80 : vector<8x128xf32>
      %c0_38 = arith.constant 0 : index
      %c0_39 = arith.constant 0 : index
      %82 = vector.load %arg16[%c0_38, %c0_39] : memref<1x128xf32, #tpu.memory_space<vmem>>, vector<1x128xf32>
      %cst_40 = arith.constant dense<0.000000e+00> : vector<128xf32>
      %83 = vector.multi_reduction <add>, %81, %cst_40 [0] : vector<8x128xf32> to vector<128xf32>
      %84 = vector.shape_cast %83 : vector<128xf32> to vector<1x128xf32>
      %85 = arith.addf %82, %84 : vector<1x128xf32>
      %c0_41 = arith.constant 0 : index
      %c0_42 = arith.constant 0 : index
      %86 = vector.load %arg16[%c0_41, %c0_42] : memref<1x128xf32, #tpu.memory_space<vmem>>, vector<1x128xf32>
      tpu.vector_store %arg16[%c0_41, %c0_42], %85 {strides = array<i32>} : memref<1x128xf32, #tpu.memory_space<vmem>>, vector<1x128xf32>,
      %c0_43 = arith.constant 0 : index
      %c0_44 = arith.constant 0 : index
      %87 = vector.load %arg17[%c0_43, %c0_44] : memref<1x128xf32, #tpu.memory_space<vmem>>, vector<1x128xf32>
      %88 = arith.mulf %81, %81 : vector<8x128xf32>
      %cst_45 = arith.constant dense<0.000000e+00> : vector<128xf32>
      %89 = vector.multi_reduction <add>, %88, %cst_45 [0] : vector<8x128xf32> to vector<128xf32>
      %90 = vector.shape_cast %89 : vector<128xf32> to vector<1x128xf32>
      %91 = arith.addf %87, %90 : vector<1x128xf32>
      %c0_46 = arith.constant 0 : index
      %c0_47 = arith.constant 0 : index
      %92 = vector.load %arg17[%c0_46, %c0_47] : memref<1x128xf32, #tpu.memory_space<vmem>>, vector<1x128xf32>
      tpu.vector_store %arg17[%c0_46, %c0_47], %91 {strides = array<i32>} : memref<1x128xf32, #tpu.memory_space<vmem>>, vector<1x128xf32>,
    } else {
    }
    %c2_i32 = arith.constant 2 : i32
    %43 = arith.cmpi eq, %arg0, %c2_i32 : i32
    %44 = arith.extui %43 : i1 to i32
    %cst_19 = arith.constant 1.250000e-01 : f32
    %c0_i32_20 = arith.constant 0 : i32
    %45 = arith.cmpi ne, %44, %c0_i32_20 : i32
    scf.if %45 {
      %c0_21 = arith.constant 0 : index
      %c0_22 = arith.constant 0 : index
      %46 = vector.load %arg5[%c0_21, %c0_22] : memref<1x64xf32, #tpu.memory_space<vmem>>, vector<1x64xf32>
      %c0_23 = arith.constant 0 : index
      %c0_24 = arith.constant 0 : index
      %47 = vector.load %arg6[%c0_23, %c0_24] : memref<1x64xf32, #tpu.memory_space<vmem>>, vector<1x64xf32>
      %c0_25 = arith.constant 0 : index
      %c0_26 = arith.constant 0 : index
      %48 = vector.load %arg14[%c0_25, %c0_26] : memref<1x64xf32, #tpu.memory_space<vmem>>, vector<1x64xf32>
      %49 = vector.broadcast %cst_19 : f32 to vector<1x64xf32>
      %50 = arith.mulf %48, %49 : vector<1x64xf32>
      %c0_27 = arith.constant 0 : index
      %c0_28 = arith.constant 0 : index
      %51 = vector.load %arg15[%c0_27, %c0_28] : memref<1x64xf32, #tpu.memory_space<vmem>>, vector<1x64xf32>
      %52 = vector.broadcast %cst_19 : f32 to vector<1x64xf32>
      %53 = arith.mulf %51, %52 : vector<1x64xf32>
      %54 = arith.mulf %50, %50 : vector<1x64xf32>
      %55 = arith.subf %53, %54 : vector<1x64xf32>
      %cst_29 = arith.constant 0.000000e+00 : f32
      %56 = vector.broadcast %cst_29 : f32 to vector<1x64xf32>
      %57 = arith.maximumf %55, %56 : vector<1x64xf32>
      %58 = vector.broadcast %50 : vector<1x64xf32> to vector<8x64xf32>
      %59 = arith.subf %36, %58 : vector<8x64xf32>
      %cst_30 = arith.constant 9.99999974E-6 : f32
      %60 = vector.broadcast %cst_30 : f32 to vector<1x64xf32>
      %61 = arith.addf %57, %60 : vector<1x64xf32>
      %62 = math.rsqrt %61 : vector<1x64xf32>
      %63 = vector.broadcast %62 : vector<1x64xf32> to vector<8x64xf32>
      %64 = arith.mulf %59, %63 : vector<8x64xf32>
      %65 = vector.broadcast %46 : vector<1x64xf32> to vector<8x64xf32>
      %66 = arith.mulf %64, %65 : vector<8x64xf32>
      %67 = vector.broadcast %47 : vector<1x64xf32> to vector<8x64xf32>
      %68 = arith.addf %66, %67 : vector<8x64xf32>
      %69 = arith.truncf %68 : vector<8x64xf32> to vector<8x64xbf16>
      %c0_31 = arith.constant 0 : index
      %c0_32 = arith.constant 0 : index
      %70 = vector.load %arg7[%c0_31, %c0_32] : memref<64x128xbf16, #tpu.memory_space<vmem>>, vector<64x128xbf16>
      %cst_33 = arith.constant dense<0.000000e+00> : vector<8x128xf32>
      %71 = tpu.matmul %69, %70, %cst_33 {dimension_numbers = #tpu.dot_dimension_numbers<[1], [0], [0], [1], [0, 0, 1, 1], [], []>} : vector<8x64xbf16>, vector<64x128xbf16>, vector<8x128xf32> -> vector<8x128xf32>
      %c0_34 = arith.constant 0 : index
      %c0_35 = arith.constant 0 : index
      %72 = vector.load %arg8[%c0_34, %c0_35] : memref<1x128xf32, #tpu.memory_space<vmem>>, vector<1x128xf32>
      %73 = vector.broadcast %72 : vector<1x128xf32> to vector<8x128xf32>
      %74 = arith.addf %71, %73 : vector<8x128xf32>
      %cst_36 = arith.constant 0.000000e+00 : f32
      %75 = vector.broadcast %cst_36 : f32 to vector<8x128xf32>
      %76 = arith.cmpf oge, %74, %75 : vector<8x128xf32>
      %cst_37 = arith.constant 5.000000e-02 : f32
      %77 = vector.broadcast %cst_37 : f32 to vector<8x128xf32>
      %78 = arith.mulf %77, %74 : vector<8x128xf32>
      %79 = arith.select %76, %74, %78 : vector<8x128xi1>, vector<8x128xf32>
      %c0_38 = arith.constant 0 : index
      %c0_39 = arith.constant 0 : index
      %80 = vector.load %arg9[%c0_38, %c0_39] : memref<1x128xf32, #tpu.memory_space<vmem>>, vector<1x128xf32>
      %c0_40 = arith.constant 0 : index
      %c0_41 = arith.constant 0 : index
      %81 = vector.load %arg10[%c0_40, %c0_41] : memref<1x128xf32, #tpu.memory_space<vmem>>, vector<1x128xf32>
      %c0_42 = arith.constant 0 : index
      %c0_43 = arith.constant 0 : index
      %82 = vector.load %arg16[%c0_42, %c0_43] : memref<1x128xf32, #tpu.memory_space<vmem>>, vector<1x128xf32>
      %83 = vector.broadcast %cst_19 : f32 to vector<1x128xf32>
      %84 = arith.mulf %82, %83 : vector<1x128xf32>
      %c0_44 = arith.constant 0 : index
      %c0_45 = arith.constant 0 : index
      %85 = vector.load %arg17[%c0_44, %c0_45] : memref<1x128xf32, #tpu.memory_space<vmem>>, vector<1x128xf32>
      %86 = vector.broadcast %cst_19 : f32 to vector<1x128xf32>
      %87 = arith.mulf %85, %86 : vector<1x128xf32>
      %88 = arith.mulf %84, %84 : vector<1x128xf32>
      %89 = arith.subf %87, %88 : vector<1x128xf32>
      %cst_46 = arith.constant 0.000000e+00 : f32
      %90 = vector.broadcast %cst_46 : f32 to vector<1x128xf32>
      %91 = arith.maximumf %89, %90 : vector<1x128xf32>
      %92 = vector.broadcast %84 : vector<1x128xf32> to vector<8x128xf32>
      %93 = arith.subf %79, %92 : vector<8x128xf32>
      %cst_47 = arith.constant 9.99999974E-6 : f32
      %94 = vector.broadcast %cst_47 : f32 to vector<1x128xf32>
      %95 = arith.addf %91, %94 : vector<1x128xf32>
      %96 = math.rsqrt %95 : vector<1x128xf32>
      %97 = vector.broadcast %96 : vector<1x128xf32> to vector<8x128xf32>
      %98 = arith.mulf %93, %97 : vector<8x128xf32>
      %99 = vector.broadcast %80 : vector<1x128xf32> to vector<8x128xf32>
      %100 = arith.mulf %98, %99 : vector<8x128xf32>
      %101 = vector.broadcast %81 : vector<1x128xf32> to vector<8x128xf32>
      %102 = arith.addf %100, %101 : vector<8x128xf32>
      %103 = arith.truncf %102 : vector<8x128xf32> to vector<8x128xbf16>
      %c0_48 = arith.constant 0 : index
      %c0_49 = arith.constant 0 : index
      %104 = vector.load %arg11[%c0_48, %c0_49] : memref<128x128xbf16, #tpu.memory_space<vmem>>, vector<128x128xbf16>
      %cst_50 = arith.constant dense<0.000000e+00> : vector<8x128xf32>
      %105 = tpu.matmul %103, %104, %cst_50 {dimension_numbers = #tpu.dot_dimension_numbers<[1], [0], [0], [1], [0, 0, 1, 1], [], []>} : vector<8x128xbf16>, vector<128x128xbf16>, vector<8x128xf32> -> vector<8x128xf32>
      %c0_51 = arith.constant 0 : index
      %c0_52 = arith.constant 0 : index
      %106 = vector.load %arg12[%c0_51, %c0_52] : memref<1x128xf32, #tpu.memory_space<vmem>>, vector<1x128xf32>
      %107 = vector.broadcast %106 : vector<1x128xf32> to vector<8x128xf32>
      %108 = arith.addf %105, %107 : vector<8x128xf32>
      %cst_53 = arith.constant 0.000000e+00 : f32
      %109 = vector.broadcast %cst_53 : f32 to vector<8x128xf32>
      %110 = arith.cmpf oge, %108, %109 : vector<8x128xf32>
      %cst_54 = arith.constant 5.000000e-02 : f32
      %111 = vector.broadcast %cst_54 : f32 to vector<8x128xf32>
      %112 = arith.mulf %111, %108 : vector<8x128xf32>
      %113 = arith.select %110, %108, %112 : vector<8x128xi1>, vector<8x128xf32>
      %114 = math.exp2 %113 : vector<8x128xf32>
      %cst_55 = arith.constant 1.000000e+00 : f32
      %115 = vector.broadcast %cst_55 : f32 to vector<8x128xf32>
      %116 = arith.subf %114, %115 : vector<8x128xf32>
      %c0_56 = arith.constant 0 : index
      %c0_57 = arith.constant 0 : index
      %117 = vector.load %arg13[%c0_56, %c0_57] : memref<8x128xf32, #tpu.memory_space<vmem>>, vector<8x128xf32>
      tpu.vector_store %arg13[%c0_56, %c0_57], %116 {strides = array<i32>} : memref<8x128xf32, #tpu.memory_space<vmem>>, vector<8x128xf32>,
    } else {
    }
    return
  }
  func.func @transform_0(%arg0: i32, %arg1: i32) -> (i32, i32) {
    %c0_i32 = arith.constant 0 : i32
    %c0_i32_0 = arith.constant 0 : i32
    return %arg1, %c0_i32 : i32, i32
  }
  func.func @transform_1(%arg0: i32, %arg1: i32) -> (i32, i32) {
    %c0_i32 = arith.constant 0 : i32
    %c0_i32_0 = arith.constant 0 : i32
    %c0_i32_1 = arith.constant 0 : i32
    return %c0_i32, %c0_i32_0 : i32, i32
  }
  func.func @transform_2(%arg0: i32, %arg1: i32) -> (i32, i32) {
    %c0_i32 = arith.constant 0 : i32
    %c0_i32_0 = arith.constant 0 : i32
    %c0_i32_1 = arith.constant 0 : i32
    return %c0_i32, %c0_i32_0 : i32, i32
  }
  func.func @transform_3(%arg0: i32, %arg1: i32) -> (i32, i32) {
    %c0_i32 = arith.constant 0 : i32
    %c0_i32_0 = arith.constant 0 : i32
    %c0_i32_1 = arith.constant 0 : i32
    return %c0_i32, %c0_i32_0 : i32, i32
  }
  func.func @transform_4(%arg0: i32, %arg1: i32) -> (i32, i32) {
    %c0_i32 = arith.constant 0 : i32
    %c0_i32_0 = arith.constant 0 : i32
    %c0_i32_1 = arith.constant 0 : i32
    return %c0_i32, %c0_i32_0 : i32, i32
  }
  func.func @transform_5(%arg0: i32, %arg1: i32) -> (i32, i32) {
    %c0_i32 = arith.constant 0 : i32
    %c0_i32_0 = arith.constant 0 : i32
    %c0_i32_1 = arith.constant 0 : i32
    return %c0_i32, %c0_i32_0 : i32, i32
  }
  func.func @transform_6(%arg0: i32, %arg1: i32) -> (i32, i32) {
    %c0_i32 = arith.constant 0 : i32
    %c0_i32_0 = arith.constant 0 : i32
    %c0_i32_1 = arith.constant 0 : i32
    return %c0_i32, %c0_i32_0 : i32, i32
  }
  func.func @transform_7(%arg0: i32, %arg1: i32) -> (i32, i32) {
    %c0_i32 = arith.constant 0 : i32
    %c0_i32_0 = arith.constant 0 : i32
    %c0_i32_1 = arith.constant 0 : i32
    return %c0_i32, %c0_i32_0 : i32, i32
  }
  func.func @transform_8(%arg0: i32, %arg1: i32) -> (i32, i32) {
    %c0_i32 = arith.constant 0 : i32
    %c0_i32_0 = arith.constant 0 : i32
    %c0_i32_1 = arith.constant 0 : i32
    return %c0_i32, %c0_i32_0 : i32, i32
  }
  func.func @transform_9(%arg0: i32, %arg1: i32) -> (i32, i32) {
    %c0_i32 = arith.constant 0 : i32
    %c0_i32_0 = arith.constant 0 : i32
    %c0_i32_1 = arith.constant 0 : i32
    return %c0_i32, %c0_i32_0 : i32, i32
  }
  func.func @transform_10(%arg0: i32, %arg1: i32) -> (i32, i32) {
    %c0_i32 = arith.constant 0 : i32
    %c0_i32_0 = arith.constant 0 : i32
    %c0_i32_1 = arith.constant 0 : i32
    return %c0_i32, %c0_i32_0 : i32, i32
  }
  func.func @transform_11(%arg0: i32, %arg1: i32) -> (i32, i32) {
    %c2_i32 = arith.constant 2 : i32
    %0 = arith.cmpi eq, %arg0, %c2_i32 : i32
    %c0_i32 = arith.constant 0 : i32
    %1 = arith.select %0, %arg1, %c0_i32 : i32
    %c0_i32_0 = arith.constant 0 : i32
    %c0_i32_1 = arith.constant 0 : i32
    return %1, %c0_i32_0 : i32, i32
  }
}

</mosaic_0001>

<llo_original>
// kernel: tpu_custom_call.1
$region0: #{tpu_custom_call.1}
  #allocation0 [shape = 'u32[]', space=smem, size = 0x4, offset = 0x4, fixed_abs, tag = 'smem constant byte address 0x4 - core index']
  #allocation1 [shape = 'u32[72,128]{1,0:T(1,128)}', space=vmem, size = 0x9000, scoped, tag = 'internal scratch']
  #allocation2 [shape = 'f32[1,64]{1,0:T(1,128)}', space=vmem, size = 0x200, scoped, tag = 'scratch operand']
  #allocation3 [shape = 'f32[1,64]{1,0:T(1,128)}', space=vmem, size = 0x200, scoped, tag = 'scratch operand']
  #allocation4 [shape = 'f32[1,128]{1,0:T(1,128)}', space=vmem, size = 0x200, scoped, tag = 'scratch operand']
  #allocation5 [shape = 'f32[1,128]{1,0:T(1,128)}', space=vmem, size = 0x200, scoped, tag = 'scratch operand']
  %s0 = inlined_call_operand.hbm [shape: f32[8,16], index: 0, kind: input, shape index: {}]
  %s1 = inlined_call_operand.hbm [shape: bf16[16,64], index: 1, kind: input, shape index: {}]
  %s2 = inlined_call_operand.vmem [shape: f32[1,64], index: 2, kind: input, shape index: {}]
  %s3 = inlined_call_operand.vmem [shape: f32[1,64], index: 3, kind: input, shape index: {}]
  %s4 = inlined_call_operand.vmem [shape: f32[1,64], index: 4, kind: input, shape index: {}]
  %s5 = inlined_call_operand.hbm [shape: bf16[64,128], index: 5, kind: input, shape index: {}]
  %s6 = inlined_call_operand.vmem [shape: f32[1,128], index: 6, kind: input, shape index: {}]
  %s7 = inlined_call_operand.vmem [shape: f32[1,128], index: 7, kind: input, shape index: {}]
  %s8 = inlined_call_operand.vmem [shape: f32[1,128], index: 8, kind: input, shape index: {}]
  %s9 = inlined_call_operand.hbm [shape: bf16[128,128], index: 9, kind: input, shape index: {}]
  %s10 = inlined_call_operand.vmem [shape: f32[1,128], index: 10, kind: input, shape index: {}]
  %s11 = inlined_call_operand.hbm [shape: f32[8,128], index: 11, kind: output, shape index: {}]
  %s12 = sld [smem:[#allocation0]]
  $region109: #{tpu_custom_call.1} parent=0
    _
  %s14 = ssub.s32 1, %s12
  %s15 = scalar_select 0, %s14, %s12
  $region1: #{tpu_custom_call.1} parent=0
    #allocation6 [shape = 'u8[4096]{0}', space=vmem, size = 0x1000, scoped, tag = 'input window, operand 0, single buffered']
    #allocation7 [shape = 's32[2]{0}', space=sflag, size = 0x8, scoped, tag = 'scoped memory for tpu_custom_call.1']
    #allocation8 [shape = 's32[2]{0}', space=sflag, size = 0x8, scoped, tag = 'scoped memory for tpu_custom_call.1']
    #allocation9 [shape = 'u8[4096]{0}', space=vmem, size = 0x1000, scoped, tag = 'input window, operand 1, single buffered']
    #allocation10 [shape = 's32[1]{0}', space=sflag, size = 0x4, scoped, tag = 'scoped memory for tpu_custom_call.1']
    #allocation11 [shape = 'u8[16384]{0}', space=vmem, size = 0x4000, scoped, tag = 'input window, operand 5, single buffered']
    #allocation12 [shape = 'u8[32768]{0}', space=vmem, size = 0x8000, scoped, tag = 'input window, operand 9, single buffered']
    #allocation13 [shape = 's32[1]{0}', space=sflag, size = 0x4, scoped, tag = 'scoped memory for tpu_custom_call.1']
    #allocation14 [shape = 'u8[8192]{0}', space=vmem, size = 0x2000, scoped, tag = 'output window, operand 0']
    %16 = vsyncpa [#allocation7], 0
    %17 = vsyncpa [#allocation10], 0
    %18 = vsyncpa [#allocation13], 0
    %19 = vsyncpa [#allocation8], 0
    %s20 = scalar_lea.sflag [#allocation8], 1
    %21 = vsyncpa %s20, 0
    loop: start=0, step=1, limit=5
    $region2: #{tpu_custom_call.1} parent=1 // loop_pre_header
      _
    $region3: #{tpu_custom_call.1} parent=1 // loop_header
      %s23 = sphi 0, %s27
      %p24 = scmp.ge.s32.totalorder %s23, 5
      %s30 = sphi 0, %s42
      %s31 = sphi 0, %s38
      %s32 = sphi 0, %s30
      %s33 = sphi 0, %s31
      %s34 = sphi 0, %s32
      %s35 = sphi 0, %s33
      %s45 = sphi 0, %s47
      %s48 = sphi 0, %s45
      %s49 = sphi 0, %s48
      %s65 = sphi 0, %s49
      %s69 = sphi 0, %s69
      %s71 = sphi 0, %s69
      %s72 = sphi 0, %s71
      %s86 = sphi 0, %s72
      %s90 = sphi 0, %s90
      %s92 = sphi 0, %s90
      %s93 = sphi 0, %s92
      %s107 = sphi 0, %s93
      %s111 = sphi 0, %s111
      %s113 = sphi 0, %s111
      %s114 = sphi 0, %s113
      %s128 = sphi 0, %s114
      %s132 = sphi 0, %s132
      %s134 = sphi 0, %s132
      %s135 = sphi 0, %s134
      %s149 = sphi 0, %s135
      %s153 = sphi 0, %s153
      %s155 = sphi 0, %s153
      %s156 = sphi 0, %s155
      %s170 = sphi 0, %s156
      %s174 = sphi 0, %s174
      %s176 = sphi 0, %s174
      %s177 = sphi 0, %s176
      %s191 = sphi 0, %s177
      %s195 = sphi 0, %s195
      %s197 = sphi 0, %s195
      %s198 = sphi 0, %s197
      %s212 = sphi 0, %s198
      %s216 = sphi 0, %s216
      %s218 = sphi 0, %s216
      %s219 = sphi 0, %s218
      %s233 = sphi 0, %s219
      %s237 = sphi 0, %s237
      %s239 = sphi 0, %s237
      %s240 = sphi 0, %s239
      %s254 = sphi 0, %s240
      %s258 = sphi 0, %s258
      %s260 = sphi 0, %s258
      %s261 = sphi 0, %s260
      %s275 = sphi 0, %s261
      %s285 = sphi 0, %s287
      %s288 = sphi 0, %s285
      %s289 = sphi 0, %s288
      %s305 = sphi 0, %s289
    $region4: #{tpu_custom_call.1} parent=1 // loop_header_branch
      %26 = sbr.rel (%p24) target = $region8
    $region5: #{tpu_custom_call.1} parent=1 // loop_body
      %s28 = ssub.s32 %s23, 1
      %s29 = ssub.s32 %s23, 2
      %s36 = sadd.s32 1, %s31
      %p37 = scmp.ge.s32.totalorder %s36, 1
      %s38 = scalar_select %p37, 0, %s36
      %s39 = sadd.s32 1, %s30
      %s40 = scalar_select %p37, %s39, %s30
      %p41 = scmp.ge.s32.totalorder %s40, 3
      %s42 = scalar_select %p41, 0, %s40
      %s43 = ssub.s32 %s31, %s38
      %p44 = scmp.eq.s32.totalorder %s43, 0
      %s46 = sadd.s32 %s45, 1
      %s47 = scalar_select %p44, %s45, %s46
      %p50 = pneg %p44
      %p51 = scmp.eq.s32.totalorder %s23, 2
      %p52 = por %p50, %p51
      %p53 = scmp.ne.s32.totalorder %s45, %s48
      %p54 = scmp.eq.s32.totalorder %s23, 0
      %p55 = por %p53, %p54
      %p56 = scmp.ne.s32.totalorder %s45, %s48
      %p57 = scmp.eq.s32.totalorder %s28, 2
      %p58 = por %p56, %p57
      %p59 = scmp.ne.s32.totalorder %s48, %s49
      %p60 = scmp.eq.s32.totalorder %s28, 0
      %p61 = por %p59, %p60
      %p62 = scmp.ne.s32.totalorder %s48, %s49
      %p63 = scmp.eq.s32.totalorder %s29, 2
      %p64 = por %p62, %p63
      %p66 = scmp.ne.s32.totalorder %s49, %s65
      %p67 = scmp.eq.s32.totalorder %s29, 0
      %p68 = por %p66, %p67
      %s70 = sadd.s32 %s69, 1
      %p73 = scmp.eq.s32.totalorder %s23, 2
      %p74 = scmp.ne.s32.totalorder %s69, %s71
      %p75 = scmp.eq.s32.totalorder %s23, 0
      %p76 = por %p74, %p75
      %p77 = scmp.ne.s32.totalorder %s69, %s71
      %p78 = scmp.eq.s32.totalorder %s28, 2
      %p79 = por %p77, %p78
      %p80 = scmp.ne.s32.totalorder %s71, %s72
      %p81 = scmp.eq.s32.totalorder %s28, 0
      %p82 = por %p80, %p81
      %p83 = scmp.ne.s32.totalorder %s71, %s72
      %p84 = scmp.eq.s32.totalorder %s29, 2
      %p85 = por %p83, %p84
      %p87 = scmp.ne.s32.totalorder %s72, %s86
      %p88 = scmp.eq.s32.totalorder %s29, 0
      %p89 = por %p87, %p88
      %s91 = sadd.s32 %s90, 1
      %p94 = scmp.eq.s32.totalorder %s23, 2
      %p95 = scmp.ne.s32.totalorder %s90, %s92
      %p96 = scmp.eq.s32.totalorder %s23, 0
      %p97 = por %p95, %p96
      %p98 = scmp.ne.s32.totalorder %s90, %s92
      %p99 = scmp.eq.s32.totalorder %s28, 2
      %p100 = por %p98, %p99
      %p101 = scmp.ne.s32.totalorder %s92, %s93
      %p102 = scmp.eq.s32.totalorder %s28, 0
      %p103 = por %p101, %p102
      %p104 = scmp.ne.s32.totalorder %s92, %s93
      %p105 = scmp.eq.s32.totalorder %s29, 2
      %p106 = por %p104, %p105
      %p108 = scmp.ne.s32.totalorder %s93, %s107
      %p109 = scmp.eq.s32.totalorder %s29, 0
      %p110 = por %p108, %p109
      %s112 = sadd.s32 %s111, 1
      %p115 = scmp.eq.s32.totalorder %s23, 2
      %p116 = scmp.ne.s32.totalorder %s111, %s113
      %p117 = scmp.eq.s32.totalorder %s23, 0
      %p118 = por %p116, %p117
      %p119 = scmp.ne.s32.totalorder %s111, %s113
      %p120 = scmp.eq.s32.totalorder %s28, 2
      %p121 = por %p119, %p120
      %p122 = scmp.ne.s32.totalorder %s113, %s114
      %p123 = scmp.eq.s32.totalorder %s28, 0
      %p124 = por %p122, %p123
      %p125 = scmp.ne.s32.totalorder %s113, %s114
      %p126 = scmp.eq.s32.totalorder %s29, 2
      %p127 = por %p125, %p126
      %p129 = scmp.ne.s32.totalorder %s114, %s128
      %p130 = scmp.eq.s32.totalorder %s29, 0
      %p131 = por %p129, %p130
      %s133 = sadd.s32 %s132, 1
      %p136 = scmp.eq.s32.totalorder %s23, 2
      %p137 = scmp.ne.s32.totalorder %s132, %s134
      %p138 = scmp.eq.s32.totalorder %s23, 0
      %p139 = por %p137, %p138
      %p140 = scmp.ne.s32.totalorder %s132, %s134
      %p141 = scmp.eq.s32.totalorder %s28, 2
      %p142 = por %p140, %p141
      %p143 = scmp.ne.s32.totalorder %s134, %s135
      %p144 = scmp.eq.s32.totalorder %s28, 0
      %p145 = por %p143, %p144
      %p146 = scmp.ne.s32.totalorder %s134, %s135
      %p147 = scmp.eq.s32.totalorder %s29, 2
      %p148 = por %p146, %p147
      %p150 = scmp.ne.s32.totalorder %s135, %s149
      %p151 = scmp.eq.s32.totalorder %s29, 0
      %p152 = por %p150, %p151
      %s154 = sadd.s32 %s153, 1
      %p157 = scmp.eq.s32.totalorder %s23, 2
      %p158 = scmp.ne.s32.totalorder %s153, %s155
      %p159 = scmp.eq.s32.totalorder %s23, 0
      %p160 = por %p158, %p159
      %p161 = scmp.ne.s32.totalorder %s153, %s155
      %p162 = scmp.eq.s32.totalorder %s28, 2
      %p163 = por %p161, %p162
      %p164 = scmp.ne.s32.totalorder %s155, %s156
      %p165 = scmp.eq.s32.totalorder %s28, 0
      %p166 = por %p164, %p165
      %p167 = scmp.ne.s32.totalorder %s155, %s156
      %p168 = scmp.eq.s32.totalorder %s29, 2
      %p169 = por %p167, %p168
      %p171 = scmp.ne.s32.totalorder %s156, %s170
      %p172 = scmp.eq.s32.totalorder %s29, 0
      %p173 = por %p171, %p172
      %s175 = sadd.s32 %s174, 1
      %p178 = scmp.eq.s32.totalorder %s23, 2
      %p179 = scmp.ne.s32.totalorder %s174, %s176
      %p180 = scmp.eq.s32.totalorder %s23, 0
      %p181 = por %p179, %p180
      %p182 = scmp.ne.s32.totalorder %s174, %s176
      %p183 = scmp.eq.s32.totalorder %s28, 2
      %p184 = por %p182, %p183
      %p185 = scmp.ne.s32.totalorder %s176, %s177
      %p186 = scmp.eq.s32.totalorder %s28, 0
      %p187 = por %p185, %p186
      %p188 = scmp.ne.s32.totalorder %s176, %s177
      %p189 = scmp.eq.s32.totalorder %s29, 2
      %p190 = por %p188, %p189
      %p192 = scmp.ne.s32.totalorder %s177, %s191
      %p193 = scmp.eq.s32.totalorder %s29, 0
      %p194 = por %p192, %p193
      %s196 = sadd.s32 %s195, 1
      %p199 = scmp.eq.s32.totalorder %s23, 2
      %p200 = scmp.ne.s32.totalorder %s195, %s197
      %p201 = scmp.eq.s32.totalorder %s23, 0
      %p202 = por %p200, %p201
      %p203 = scmp.ne.s32.totalorder %s195, %s197
      %p204 = scmp.eq.s32.totalorder %s28, 2
      %p205 = por %p203, %p204
      %p206 = scmp.ne.s32.totalorder %s197, %s198
      %p207 = scmp.eq.s32.totalorder %s28, 0
      %p208 = por %p206, %p207
      %p209 = scmp.ne.s32.totalorder %s197, %s198
      %p210 = scmp.eq.s32.totalorder %s29, 2
      %p211 = por %p209, %p210
      %p213 = scmp.ne.s32.totalorder %s198, %s212
      %p214 = scmp.eq.s32.totalorder %s29, 0
      %p215 = por %p213, %p214
      %s217 = sadd.s32 %s216, 1
      %p220 = scmp.eq.s32.totalorder %s23, 2
      %p221 = scmp.ne.s32.totalorder %s216, %s218
      %p222 = scmp.eq.s32.totalorder %s23, 0
      %p223 = por %p221, %p222
      %p224 = scmp.ne.s32.totalorder %s216, %s218
      %p225 = scmp.eq.s32.totalorder %s28, 2
      %p226 = por %p224, %p225
      %p227 = scmp.ne.s32.totalorder %s218, %s219
      %p228 = scmp.eq.s32.totalorder %s28, 0
      %p229 = por %p227, %p228
      %p230 = scmp.ne.s32.totalorder %s218, %s219
      %p231 = scmp.eq.s32.totalorder %s29, 2
      %p232 = por %p230, %p231
      %p234 = scmp.ne.s32.totalorder %s219, %s233
      %p235 = scmp.eq.s32.totalorder %s29, 0
      %p236 = por %p234, %p235
      %s238 = sadd.s32 %s237, 1
      %p241 = scmp.eq.s32.totalorder %s23, 2
      %p242 = scmp.ne.s32.totalorder %s237, %s239
      %p243 = scmp.eq.s32.totalorder %s23, 0
      %p244 = por %p242, %p243
      %p245 = scmp.ne.s32.totalorder %s237, %s239
      %p246 = scmp.eq.s32.totalorder %s28, 2
      %p247 = por %p245, %p246
      %p248 = scmp.ne.s32.totalorder %s239, %s240
      %p249 = scmp.eq.s32.totalorder %s28, 0
      %p250 = por %p248, %p249
      %p251 = scmp.ne.s32.totalorder %s239, %s240
      %p252 = scmp.eq.s32.totalorder %s29, 2
      %p253 = por %p251, %p252
      %p255 = scmp.ne.s32.totalorder %s240, %s254
      %p256 = scmp.eq.s32.totalorder %s29, 0
      %p257 = por %p255, %p256
      %s259 = sadd.s32 %s258, 1
      %p262 = scmp.eq.s32.totalorder %s23, 2
      %p263 = scmp.ne.s32.totalorder %s258, %s260
      %p264 = scmp.eq.s32.totalorder %s23, 0
      %p265 = por %p263, %p264
      %p266 = scmp.ne.s32.totalorder %s258, %s260
      %p267 = scmp.eq.s32.totalorder %s28, 2
      %p268 = por %p266, %p267
      %p269 = scmp.ne.s32.totalorder %s260, %s261
      %p270 = scmp.eq.s32.totalorder %s28, 0
      %p271 = por %p269, %p270
      %p272 = scmp.ne.s32.totalorder %s260, %s261
      %p273 = scmp.eq.s32.totalorder %s29, 2
      %p274 = por %p272, %p273
      %p276 = scmp.ne.s32.totalorder %s261, %s275
      %p277 = scmp.eq.s32.totalorder %s29, 0
      %p278 = por %p276, %p277
      %p279 = scmp.eq.s32.totalorder %s30, 2
      %s280 = scalar_select %p279, %s31, 0
      %p281 = scmp.eq.s32.totalorder %s42, 2
      %s282 = scalar_select %p281, %s38, 0
      %s283 = ssub.s32 %s280, %s282
      %p284 = scmp.eq.s32.totalorder %s283, 0
      %s286 = sadd.s32 %s285, 1
      %s287 = scalar_select %p284, %s285, %s286
      %p290 = pneg %p284
      %p291 = scmp.eq.s32.totalorder %s23, 2
      %p292 = por %p290, %p291
      %p293 = scmp.ne.s32.totalorder %s285, %s288
      %p294 = scmp.eq.s32.totalorder %s23, 0
      %p295 = por %p293, %p294
      %p296 = scmp.ne.s32.totalorder %s285, %s288
      %p297 = scmp.eq.s32.totalorder %s28, 2
      %p298 = por %p296, %p297
      %p299 = scmp.ne.s32.totalorder %s288, %s289
      %p300 = scmp.eq.s32.totalorder %s28, 0
      %p301 = por %p299, %p300
      %p302 = scmp.ne.s32.totalorder %s288, %s289
      %p303 = scmp.eq.s32.totalorder %s29, 2
      %p304 = por %p302, %p303
      %p306 = scmp.ne.s32.totalorder %s289, %s305
      %p307 = scmp.eq.s32.totalorder %s29, 0
      %p308 = por %p306, %p307
      %p309 = scmp.le.s32.totalorder 1, %s23
      %p310 = scmp.lt.s32.totalorder %s23, 4
      %p311 = pnand %p309, %p310
      %p312 = pneg %p311
      // Predicated region
      $region9: #{tpu_custom_call.1} parent=5 // pred_check
        _
      $region10: #{tpu_custom_call.1} parent=5 // pred_check_branch
        %314 = sbr.rel (%p311) target = $region12
      $region11: #{tpu_custom_call.1} parent=5 // pred_region
        %s315 = ssub.s32 %s23, 1
        // Predicated region
        $region13: #{tpu_custom_call.1} parent=11 // pred_check
          %p316 = pneg %p61
        $region14: #{tpu_custom_call.1} parent=11 // pred_check_branch
          %318 = sbr.rel (%p316) target = $region16
        $region15: #{tpu_custom_call.1} parent=11 // pred_region
          %320 = vsyncadd [#allocation7], 0
          %s321 = smul.addr %s33, 8
          %s322 = scalar_lea.hbm %s0, %s321
          %s324 = sshll.u32 %s322, 4
          %s325 = int_to_ptr.hbm [resolvable:$true] %s324
          %s326 = sshll.u32 [#allocation6], 4
          %s327 = int_to_ptr.vmem [resolvable:$true] %s326
          %329 = dma.hbm_to_vmem [thread:$0]  %s325, 128, %s327, [#allocation7]
        $region16: #{tpu_custom_call.1} parent=11 // pred_fallthru
          _
        // Predicated region
        $region17: #{tpu_custom_call.1} parent=11 // pred_check
          %p330 = pneg %p82
        $region18: #{tpu_custom_call.1} parent=11 // pred_check_branch
          %332 = sbr.rel (%p330) target = $region20
        $region19: #{tpu_custom_call.1} parent=11 // pred_region
          %334 = vsyncadd [#allocation10], 0
          %s335 = sshll.u32 %s1, 4
          %s336 = int_to_ptr.hbm [resolvable:$true] %s335
          %s337 = sshll.u32 [#allocation9], 4
          %s338 = int_to_ptr.vmem [resolvable:$true] %s337
          %343 = dma.hbm_to_vmem [thread:$0]  %s336, 128, %s338, [#allocation10], 64, 64, 4
        $region20: #{tpu_custom_call.1} parent=11 // pred_fallthru
          _
        // Predicated region
        $region21: #{tpu_custom_call.1} parent=11 // pred_check
          %p344 = pneg %p103
        $region22: #{tpu_custom_call.1} parent=11 // pred_check_branch
          %346 = sbr.rel (%p344) target = $region24
        $region23: #{tpu_custom_call.1} parent=11 // pred_region
          _
        $region24: #{tpu_custom_call.1} parent=11 // pred_fallthru
          _
        // Predicated region
        $region25: #{tpu_custom_call.1} parent=11 // pred_check
          %p347 = pneg %p124
        $region26: #{tpu_custom_call.1} parent=11 // pred_check_branch
          %349 = sbr.rel (%p347) target = $region28
        $region27: #{tpu_custom_call.1} parent=11 // pred_region
          _
        $region28: #{tpu_custom_call.1} parent=11 // pred_fallthru
          _
        // Predicated region
        $region29: #{tpu_custom_call.1} parent=11 // pred_check
          %p350 = pneg %p145
        $region30: #{tpu_custom_call.1} parent=11 // pred_check_branch
          %352 = sbr.rel (%p350) target = $region32
        $region31: #{tpu_custom_call.1} parent=11 // pred_region
          _
        $region32: #{tpu_custom_call.1} parent=11 // pred_fallthru
          _
        // Predicated region
        $region33: #{tpu_custom_call.1} parent=11 // pred_check
          %p353 = pneg %p166
        $region34: #{tpu_custom_call.1} parent=11 // pred_check_branch
          %355 = sbr.rel (%p353) target = $region36
        $region35: #{tpu_custom_call.1} parent=11 // pred_region
          %357 = vsyncadd [#allocation10], 0
          %s358 = sshll.u32 %s5, 4
          %s359 = int_to_ptr.hbm [resolvable:$true] %s358
          %s360 = sshll.u32 [#allocation11], 4
          %s361 = int_to_ptr.vmem [resolvable:$true] %s360
          %366 = dma.hbm_to_vmem [thread:$0]  %s359, 512, %s361, [#allocation10], 64, 64, 4
        $region36: #{tpu_custom_call.1} parent=11 // pred_fallthru
          _
        // Predicated region
        $region37: #{tpu_custom_call.1} parent=11 // pred_check
          %p367 = pneg %p187
        $region38: #{tpu_custom_call.1} parent=11 // pred_check_branch
          %369 = sbr.rel (%p367) target = $region40
        $region39: #{tpu_custom_call.1} parent=11 // pred_region
          _
        $region40: #{tpu_custom_call.1} parent=11 // pred_fallthru
          _
        // Predicated region
        $region41: #{tpu_custom_call.1} parent=11 // pred_check
          %p370 = pneg %p208
        $region42: #{tpu_custom_call.1} parent=11 // pred_check_branch
          %372 = sbr.rel (%p370) target = $region44
        $region43: #{tpu_custom_call.1} parent=11 // pred_region
          _
        $region44: #{tpu_custom_call.1} parent=11 // pred_fallthru
          _
        // Predicated region
        $region45: #{tpu_custom_call.1} parent=11 // pred_check
          %p373 = pneg %p229
        $region46: #{tpu_custom_call.1} parent=11 // pred_check_branch
          %375 = sbr.rel (%p373) target = $region48
        $region47: #{tpu_custom_call.1} parent=11 // pred_region
          _
        $region48: #{tpu_custom_call.1} parent=11 // pred_fallthru
          _
        // Predicated region
        $region49: #{tpu_custom_call.1} parent=11 // pred_check
          %p376 = pneg %p250
        $region50: #{tpu_custom_call.1} parent=11 // pred_check_branch
          %378 = sbr.rel (%p376) target = $region52
        $region51: #{tpu_custom_call.1} parent=11 // pred_region
          %380 = vsyncadd [#allocation13], 0
          %s381 = sshll.u32 %s9, 4
          %s382 = int_to_ptr.hbm [resolvable:$true] %s381
          %s383 = sshll.u32 [#allocation12], 4
          %s384 = int_to_ptr.vmem [resolvable:$true] %s383
          %389 = dma.hbm_to_vmem [thread:$0]  %s382, 1024, %s384, [#allocation13], 64, 64, 4
        $region52: #{tpu_custom_call.1} parent=11 // pred_fallthru
          _
        // Predicated region
        $region53: #{tpu_custom_call.1} parent=11 // pred_check
          %p390 = pneg %p271
        $region54: #{tpu_custom_call.1} parent=11 // pred_check_branch
          %392 = sbr.rel (%p390) target = $region56
        $region55: #{tpu_custom_call.1} parent=11 // pred_region
          _
        $region56: #{tpu_custom_call.1} parent=11 // pred_fallthru
          _
      $region12: #{tpu_custom_call.1} parent=5 // pred_fallthru
        _
      %p393 = scmp.lt.s32.totalorder %s23, 3
      // Predicated region
      $region57: #{tpu_custom_call.1} parent=5 // pred_check
        %p394 = pneg %p393
      $region58: #{tpu_custom_call.1} parent=5 // pred_check_branch
        %396 = sbr.rel (%p394) target = $region60
      $region59: #{tpu_custom_call.1} parent=5 // pred_region
        _
      $region60: #{tpu_custom_call.1} parent=5 // pred_fallthru
        _
      %p397 = scmp.le.s32.totalorder 1, %s23
      %p398 = scmp.lt.s32.totalorder %s23, 4
      %p399 = pnand %p397, %p398
      %p400 = pneg %p399
      // Predicated region
      $region61: #{tpu_custom_call.1} parent=5 // pred_check
        _
      $region62: #{tpu_custom_call.1} parent=5 // pred_check_branch
        %402 = sbr.rel (%p399) target = $region64
      $region63: #{tpu_custom_call.1} parent=5 // pred_region
        %s403 = ssub.s32 %s23, 1
        // Predicated region
        $region65: #{tpu_custom_call.1} parent=63 // pred_check
          %p404 = pneg %p61
        $region66: #{tpu_custom_call.1} parent=63 // pred_check_branch
          %406 = sbr.rel (%p404) target = $region68
        $region67: #{tpu_custom_call.1} parent=63 // pred_region
          %408 = dma.done [#allocation7], 128
        $region68: #{tpu_custom_call.1} parent=63 // pred_fallthru
          _
        // Predicated region
        $region69: #{tpu_custom_call.1} parent=63 // pred_check
          %p409 = pneg %p82
        $region70: #{tpu_custom_call.1} parent=63 // pred_check_branch
          %411 = sbr.rel (%p409) target = $region72
        $region71: #{tpu_custom_call.1} parent=63 // pred_region
          %413 = dma.done [#allocation10], 128
        $region72: #{tpu_custom_call.1} parent=63 // pred_fallthru
          _
        // Predicated region
        $region73: #{tpu_custom_call.1} parent=63 // pred_check
          %p414 = pneg %p166
        $region74: #{tpu_custom_call.1} parent=63 // pred_check_branch
          %416 = sbr.rel (%p414) target = $region76
        $region75: #{tpu_custom_call.1} parent=63 // pred_region
          %418 = dma.done [#allocation10], 512
        $region76: #{tpu_custom_call.1} parent=63 // pred_fallthru
          _
        // Predicated region
        $region77: #{tpu_custom_call.1} parent=63 // pred_check
          %p419 = pneg %p250
        $region78: #{tpu_custom_call.1} parent=63 // pred_check_branch
          %421 = sbr.rel (%p419) target = $region80
        $region79: #{tpu_custom_call.1} parent=63 // pred_region
          %423 = dma.done [#allocation13], 1024
        $region80: #{tpu_custom_call.1} parent=63 // pred_fallthru
          _
        %p424 = pneg %p61
        %p425 = pneg %p58
        %p426 = pneg %p82
        %p427 = pneg %p79
        %p428 = pneg %p103
        %p429 = pneg %p100
        %p430 = pneg %p124
        %p431 = pneg %p121
        %p432 = pneg %p145
        %p433 = pneg %p142
        %p434 = pneg %p166
        %p435 = pneg %p163
        %p436 = pneg %p187
        %p437 = pneg %p184
        %p438 = pneg %p208
        %p439 = pneg %p205
        %p440 = pneg %p229
        %p441 = pneg %p226
        %p442 = pneg %p250
        %p443 = pneg %p247
        %p444 = pneg %p271
        %p445 = pneg %p268
        %p446 = pneg %p301
        %p447 = pneg %p298
        %s448 = sand.u32 %s288, 1
        %s449 = scalar_lea.sflag [#allocation8], %s448
        %s450 = sand.u32 %s288, 1
        %s451 = smul.addr %s450, 8
        %s452 = scalar_lea.vmem [#allocation14], %s451
        %p453 = scmp.eq.s32.totalorder %s32, 2
        %s454 = scalar_select %p453, %s33, 0
        %p456 = scmp.eq.s32.totalorder %s32, 0
        %p457 = scmp.eq.s32.totalorder %s33, 0
        %p458 = pnand %p456, %p457
        %p459 = pneg %p458
        // Predicated region
        $region81: #{tpu_custom_call.1} parent=63 // pred_check
          _
        $region82: #{tpu_custom_call.1} parent=63 // pred_check_branch
          %461 = sbr.rel (%p458) target = $region84
        $region83: #{tpu_custom_call.1} parent=63 // pred_region
          %vm462 = vcmask 516096
          %463 = vst.msk [vmem:[#allocation2] sm:$0x1] %vm462, 0.0
          %464 = vst.msk [vmem:[#allocation3] sm:$0x1] %vm462, 0.0
          %465 = vst [vmem:[#allocation4] sm:$0x1] 0.0
          %466 = vst [vmem:[#allocation5] sm:$0x1] 0.0
        $region84: #{tpu_custom_call.1} parent=63 // pred_fallthru
          _
        %v467 = vlaneseq
        %v468 = vshrl.u32 %v467, 7
        %s469 = smul.u32 %s33, 8
        %v470 = vstv %s469
        %v471 = vadd.s32 %v468, %v470
        %vm472 = vcmp.lt.s32.totalorder %v471, 8
        %v473 = vsel %vm472, 1, 0
        %v474 = vcvt.s32.f32 %v473
        %v475 = vld [vmem:[#allocation6] sm:$0xff]
        %vm476 = vcmp.gt.f32.partialorder %v475, 0.0
        %v477 = vsel %vm476, %v475, 1.0
        %v478 = vlog2.pop %v477
        %v479 = vmul.f32 %v478, 0.6931472
        %v480 = vrcp.pop 0.6931472
        %v481 = vmul.f32 0.6931472, %v480
        %v482 = vsub.f32 1.0, %v481
        %v483 = vmul.f32 %v480, %v482
        %v484 = vadd.f32 %v480, %v483
        %vm485 = vweird.f32 %v480
        %v486 = vsel %vm485, %v480, %v484
        %v487 = vmul.f32 %v479, %v486
        %v488 = vsel %vm476, %v487, 0.0
        %v489 = vpack.c.bf16 %v488, %v488
        %v490 = vld [vmem:[#allocation9] sm:$0xf]
        %v491 = vld [vmem:[#allocation9 + $0x4] sm:$0xf]
        %v492 = vld [vmem:[%s2] sm:$0x1]
        %v494 = vperm.slane %v492, 0
        %v498 = vunpack.c.l.b16 %v490
        %v499 = vunpack.c.l.b16 %v491
        %v500 = vpack.c.b16 %v499, %v498
        %vm502 = vcmask 130048
        %v504 = vsel %vm502, %v489, 0
        %506 = vmatpush.bf16.msra.mxu0 0
        %507 = vmatpush.bf16.msra.mxu0 0
        %508 = vmatpush.bf16.msra.mxu0 0
        %509 = vmatpush.bf16.msra.mxu0 0
        %510 = vmatpush.bf16.msra.mxu0 0
        %511 = vmatpush.bf16.msra.mxu0 0
        %512 = vmatpush.bf16.msra.mxu0 0
        %513 = vmatpush.bf16.msra.mxu0 %v500
        %514 = vmatmul.bf16.gmra.mxu0 %v504
        %v515 = vpop.f32.mrf.mxu0
        %v516 = vadd.f32 %v494, %v515
        %v517 = vpop.f32.mrf.mxu0
        %518 = vdwg.mxu0
        %vm519 = vcmp.ge.f32.partialorder %v516, 0.0
        %v520 = vmul.f32 %v516, 0.05
        %v521 = vsel %vm519, %v516, %v520
        // Predicated region
        $region85: #{tpu_custom_call.1} parent=63 // pred_check
          %p522 = pneg %p456
        $region86: #{tpu_custom_call.1} parent=63 // pred_check_branch
          %524 = sbr.rel (%p522) target = $region88
        $region87: #{tpu_custom_call.1} parent=63 // pred_region
          %v525 = vmul.f32 %v521, %v474
          %v526 = vld [vmem:[#allocation2] sm:$0x1]
          %vm527 = vcmask 523264
          %v528 = vsel %vm527, %v525, 0.0
          %v529 = vrot.slane %v528, 4
          %v530 = vadd.f32 %v528, %v529
          %v531 = vrot.slane %v530, 2
          %v532 = vadd.f32 %v530, %v531
          %v533 = vrot.slane %v532, 1
          %v534 = vadd.f32 %v532, %v533
          %v535 = vadd.f32 %v526, %v534
          %vm536 = vcmask 516096
          %537 = vst.msk [vmem:[#allocation2] sm:$0x1] %vm536, %v535
          %v538 = vld [vmem:[#allocation3] sm:$0x1]
          %v539 = vmul.f32 %v525, %v525
          %v540 = vsel %vm527, %v539, 0.0
          %v541 = vrot.slane %v540, 4
          %v542 = vadd.f32 %v540, %v541
          %v543 = vrot.slane %v542, 2
          %v544 = vadd.f32 %v542, %v543
          %v545 = vrot.slane %v544, 1
          %v546 = vadd.f32 %v544, %v545
          %v547 = vadd.f32 %v538, %v546
          %548 = vst.msk [vmem:[#allocation3] sm:$0x1] %vm536, %v547
        $region88: #{tpu_custom_call.1} parent=63 // pred_fallthru
          _
        %p549 = scmp.eq.s32.totalorder %s32, 1
        // Predicated region
        $region89: #{tpu_custom_call.1} parent=63 // pred_check
          %p550 = pneg %p549
        $region90: #{tpu_custom_call.1} parent=63 // pred_check_branch
          %552 = sbr.rel (%p550) target = $region92
        $region91: #{tpu_custom_call.1} parent=63 // pred_region
          %v553 = vld [vmem:[%s3] sm:$0x1]
          %v554 = vld [vmem:[%s4] sm:$0x1]
          %v555 = vld [vmem:[#allocation2] sm:$0x1]
          %v556 = vmul.f32 %v555, 0.125
          %v557 = vld [vmem:[#allocation3] sm:$0x1]
          %v558 = vmul.f32 %v557, 0.125
          %v559 = vmul.f32 %v556, %v556
          %v560 = vsub.f32 %v558, %v559
          %v561 = vmax.f32 %v560, 0.0
          %v563 = vperm.slane %v556, 0
          %v565 = vsub.f32 %v521, %v563
          %v566 = vadd.f32 %v561, 1e-05
          %v567 = vrsqrt.pop %v566
          %v568 = vmul.f32 %v567, %v566
          %v569 = vmul.f32 %v568, %v567
          %v570 = vmul.f32 0.5, %v569
          %v571 = vsub.f32 1.5, %v570
          %v572 = vmul.f32 %v567, %v571
          %vm573 = vweird.f32 %v566
          %vm574 = vweird.f32 %v567
          %vm575 = vmor %vm573, %vm574
          %v576 = vsel %vm575, %v567, %v572
          %v578 = vperm.slane %v576, 0
          %v580 = vmul.f32 %v565, %v578
          %v582 = vperm.slane %v553, 0
          %v584 = vmul.f32 %v580, %v582
          %v586 = vperm.slane %v554, 0
          %v588 = vadd.f32 %v584, %v586
          %v589 = vpack.c.bf16 %v588, %v588
          %v590 = vld [vmem:[#allocation11] sm:$0xf]
          %v591 = vld [vmem:[#allocation11 + $0x4] sm:$0xf]
          %v592 = vld [vmem:[#allocation11 + $0x8] sm:$0xf]
          %v593 = vld [vmem:[#allocation11 + $0xc] sm:$0xf]
          %v594 = vld [vmem:[#allocation11 + $0x10] sm:$0xf]
          %v595 = vld [vmem:[#allocation11 + $0x14] sm:$0xf]
          %v596 = vld [vmem:[#allocation11 + $0x18] sm:$0xf]
          %v597 = vld [vmem:[#allocation11 + $0x1c] sm:$0xf]
          %v598 = vld [vmem:[%s6] sm:$0x1]
          %v600 = vperm.slane %v598, 0
          %v610 = vunpack.c.l.b16 %v590
          %v611 = vunpack.c.l.b16 %v591
          %v612 = vunpack.c.l.b16 %v592
          %v613 = vunpack.c.l.b16 %v593
          %v614 = vunpack.c.l.b16 %v594
          %v615 = vunpack.c.l.b16 %v595
          %v616 = vunpack.c.l.b16 %v596
          %v617 = vunpack.c.l.b16 %v597
          %v618 = vpack.c.b16 %v611, %v610
          %v619 = vpack.c.b16 %v613, %v612
          %v620 = vpack.c.b16 %v615, %v614
          %v621 = vpack.c.b16 %v617, %v616
          %vm626 = vcmask 523264
          %v628 = vsel %vm626, %v589, 0
          %630 = vmatpush.bf16.msra.mxu0 0
          %631 = vmatpush.bf16.msra.mxu0 0
          %632 = vmatpush.bf16.msra.mxu0 0
          %633 = vmatpush.bf16.msra.mxu0 0
          %634 = vmatpush.bf16.msra.mxu0 %v621
          %635 = vmatpush.bf16.msra.mxu0 %v620
          %636 = vmatpush.bf16.msra.mxu0 %v619
          %637 = vmatpush.bf16.msra.mxu0 %v618
          %638 = vmatmul.bf16.gmra.mxu0 %v628
          %v639 = vpop.f32.mrf.mxu0
          %v640 = vadd.f32 %v600, %v639
          %v641 = vpop.f32.mrf.mxu0
          %642 = vdwg.mxu0
          %vm643 = vcmp.ge.f32.partialorder %v640, 0.0
          %v644 = vmul.f32 %v640, 0.05
          %v645 = vsel %vm643, %v640, %v644
          %v646 = vmul.f32 %v645, %v474
          %v647 = vld [vmem:[#allocation4] sm:$0x1]
          %v648 = vrot.slane %v646, 4
          %v649 = vadd.f32 %v646, %v648
          %v650 = vrot.slane %v649, 2
          %v651 = vadd.f32 %v649, %v650
          %v652 = vrot.slane %v651, 1
          %v653 = vadd.f32 %v651, %v652
          %v654 = vadd.f32 %v647, %v653
          %655 = vst [vmem:[#allocation4] sm:$0x1] %v654
          %v656 = vld [vmem:[#allocation5] sm:$0x1]
          %v657 = vmul.f32 %v646, %v646
          %v658 = vrot.slane %v657, 4
          %v659 = vadd.f32 %v657, %v658
          %v660 = vrot.slane %v659, 2
          %v661 = vadd.f32 %v659, %v660
          %v662 = vrot.slane %v661, 1
          %v663 = vadd.f32 %v661, %v662
          %v664 = vadd.f32 %v656, %v663
          %665 = vst [vmem:[#allocation5] sm:$0x1] %v664
        $region92: #{tpu_custom_call.1} parent=63 // pred_fallthru
          _
        %p666 = scmp.eq.s32.totalorder %s32, 2
        // Predicated region
        $region93: #{tpu_custom_call.1} parent=63 // pred_check
          %p667 = pneg %p666
        $region94: #{tpu_custom_call.1} parent=63 // pred_check_branch
          %669 = sbr.rel (%p667) target = $region96
        $region95: #{tpu_custom_call.1} parent=63 // pred_region
          %v670 = vld [vmem:[%s3] sm:$0x1]
          %v671 = vld [vmem:[%s4] sm:$0x1]
          %v672 = vld [vmem:[#allocation2] sm:$0x1]
          %v673 = vmul.f32 %v672, 0.125
          %v674 = vld [vmem:[#allocation3] sm:$0x1]
          %v675 = vmul.f32 %v674, 0.125
          %v676 = vmul.f32 %v673, %v673
          %v677 = vsub.f32 %v675, %v676
          %v678 = vmax.f32 %v677, 0.0
          %v680 = vperm.slane %v673, 0
          %v682 = vsub.f32 %v521, %v680
          %v683 = vadd.f32 %v678, 1e-05
          %v684 = vrsqrt.pop %v683
          %v685 = vmul.f32 %v684, %v683
          %v686 = vmul.f32 %v685, %v684
          %v687 = vmul.f32 0.5, %v686
          %v688 = vsub.f32 1.5, %v687
          %v689 = vmul.f32 %v684, %v688
          %vm690 = vweird.f32 %v683
          %vm691 = vweird.f32 %v684
          %vm692 = vmor %vm690, %vm691
          %v693 = vsel %vm692, %v684, %v689
          %v695 = vperm.slane %v693, 0
          %v697 = vmul.f32 %v682, %v695
          %v699 = vperm.slane %v670, 0
          %v701 = vmul.f32 %v697, %v699
          %v703 = vperm.slane %v671, 0
          %v705 = vadd.f32 %v701, %v703
          %v706 = vpack.c.bf16 %v705, %v705
          %v707 = vld [vmem:[#allocation11] sm:$0xf]
          %v708 = vld [vmem:[#allocation11 + $0x4] sm:$0xf]
          %v709 = vld [vmem:[#allocation11 + $0x8] sm:$0xf]
          %v710 = vld [vmem:[#allocation11 + $0xc] sm:$0xf]
          %v711 = vld [vmem:[#allocation11 + $0x10] sm:$0xf]
          %v712 = vld [vmem:[#allocation11 + $0x14] sm:$0xf]
          %v713 = vld [vmem:[#allocation11 + $0x18] sm:$0xf]
          %v714 = vld [vmem:[#allocation11 + $0x1c] sm:$0xf]
          %v715 = vld [vmem:[%s6] sm:$0x1]
          %v717 = vperm.slane %v715, 0
          %v727 = vunpack.c.l.b16 %v707
          %v728 = vunpack.c.l.b16 %v708
          %v729 = vunpack.c.l.b16 %v709
          %v730 = vunpack.c.l.b16 %v710
          %v731 = vunpack.c.l.b16 %v711
          %v732 = vunpack.c.l.b16 %v712
          %v733 = vunpack.c.l.b16 %v713
          %v734 = vunpack.c.l.b16 %v714
          %v735 = vpack.c.b16 %v728, %v727
          %v736 = vpack.c.b16 %v730, %v729
          %v737 = vpack.c.b16 %v732, %v731
          %v738 = vpack.c.b16 %v734, %v733
          %vm743 = vcmask 523264
          %v745 = vsel %vm743, %v706, 0
          %747 = vmatpush.bf16.msra.mxu0 0
          %748 = vmatpush.bf16.msra.mxu0 0
          %749 = vmatpush.bf16.msra.mxu0 0
          %750 = vmatpush.bf16.msra.mxu0 0
          %751 = vmatpush.bf16.msra.mxu0 %v738
          %752 = vmatpush.bf16.msra.mxu0 %v737
          %753 = vmatpush.bf16.msra.mxu0 %v736
          %754 = vmatpush.bf16.msra.mxu0 %v735
          %755 = vmatmul.bf16.gmra.mxu0 %v745
          %v756 = vpop.f32.mrf.mxu0
          %v757 = vadd.f32 %v717, %v756
          %v758 = vpop.f32.mrf.mxu0
          %759 = vdwg.mxu0
          %vm760 = vcmp.ge.f32.partialorder %v757, 0.0
          %v761 = vmul.f32 %v757, 0.05
          %v762 = vsel %vm760, %v757, %v761
          %v763 = vld [vmem:[%s7] sm:$0x1]
          %v764 = vld [vmem:[%s8] sm:$0x1]
          %v765 = vld [vmem:[#allocation4] sm:$0x1]
          %v766 = vmul.f32 %v765, 0.125
          %v767 = vld [vmem:[#allocation5] sm:$0x1]
          %v768 = vmul.f32 %v767, 0.125
          %v769 = vmul.f32 %v766, %v766
          %v770 = vsub.f32 %v768, %v769
          %v771 = vmax.f32 %v770, 0.0
          %v773 = vperm.slane %v766, 0
          %v775 = vsub.f32 %v762, %v773
          %v776 = vadd.f32 %v771, 1e-05
          %v777 = vrsqrt.pop %v776
          %v778 = vmul.f32 %v777, %v776
          %v779 = vmul.f32 %v778, %v777
          %v780 = vmul.f32 0.5, %v779
          %v781 = vsub.f32 1.5, %v780
          %v782 = vmul.f32 %v777, %v781
          %vm783 = vweird.f32 %v776
          %vm784 = vweird.f32 %v777
          %vm785 = vmor %vm783, %vm784
          %v786 = vsel %vm785, %v777, %v782
          %v788 = vperm.slane %v786, 0
          %v790 = vmul.f32 %v775, %v788
          %v792 = vperm.slane %v763, 0
          %v794 = vmul.f32 %v790, %v792
          %v796 = vperm.slane %v764, 0
          %v798 = vadd.f32 %v794, %v796
          %v799 = vpack.c.bf16 %v798, %v798
          %v800 = vld [vmem:[#allocation12] sm:$0xf]
          %v801 = vld [vmem:[#allocation12 + $0x4] sm:$0xf]
          %v802 = vld [vmem:[#allocation12 + $0x8] sm:$0xf]
          %v803 = vld [vmem:[#allocation12 + $0xc] sm:$0xf]
          %v804 = vld [vmem:[#allocation12 + $0x10] sm:$0xf]
          %v805 = vld [vmem:[#allocation12 + $0x14] sm:$0xf]
          %v806 = vld [vmem:[#allocation12 + $0x18] sm:$0xf]
          %v807 = vld [vmem:[#allocation12 + $0x1c] sm:$0xf]
          %v808 = vld [vmem:[#allocation12 + $0x20] sm:$0xf]
          %v809 = vld [vmem:[#allocation12 + $0x24] sm:$0xf]
          %v810 = vld [vmem:[#allocation12 + $0x28] sm:$0xf]
          %v811 = vld [vmem:[#allocation12 + $0x2c] sm:$0xf]
          %v812 = vld [vmem:[#allocation12 + $0x30] sm:$0xf]
          %v813 = vld [vmem:[#allocation12 + $0x34] sm:$0xf]
          %v814 = vld [vmem:[#allocation12 + $0x38] sm:$0xf]
          %v815 = vld [vmem:[#allocation12 + $0x3c] sm:$0xf]
          %v816 = vld [vmem:[%s10] sm:$0x1]
          %v818 = vperm.slane %v816, 0
          %v836 = vunpack.c.l.b16 %v800
          %v837 = vunpack.c.l.b16 %v801
          %v838 = vunpack.c.l.b16 %v802
          %v839 = vunpack.c.l.b16 %v803
          %v840 = vunpack.c.l.b16 %v804
          %v841 = vunpack.c.l.b16 %v805
          %v842 = vunpack.c.l.b16 %v806
          %v843 = vunpack.c.l.b16 %v807
          %v844 = vunpack.c.l.b16 %v808
          %v845 = vunpack.c.l.b16 %v809
          %v846 = vunpack.c.l.b16 %v810
          %v847 = vunpack.c.l.b16 %v811
          %v848 = vunpack.c.l.b16 %v812
          %v849 = vunpack.c.l.b16 %v813
          %v850 = vunpack.c.l.b16 %v814
          %v851 = vunpack.c.l.b16 %v815
          %v852 = vpack.c.b16 %v837, %v836
          %v853 = vpack.c.b16 %v839, %v838
          %v854 = vpack.c.b16 %v841, %v840
          %v855 = vpack.c.b16 %v843, %v842
          %v856 = vpack.c.b16 %v845, %v844
          %v857 = vpack.c.b16 %v847, %v846
          %v858 = vpack.c.b16 %v849, %v848
          %v859 = vpack.c.b16 %v851, %v850
          %868 = vmatpush.bf16.msra.mxu0 %v859
          %869 = vmatpush.bf16.msra.mxu0 %v858
          %870 = vmatpush.bf16.msra.mxu0 %v857
          %871 = vmatpush.bf16.msra.mxu0 %v856
          %872 = vmatpush.bf16.msra.mxu0 %v855
          %873 = vmatpush.bf16.msra.mxu0 %v854
          %874 = vmatpush.bf16.msra.mxu0 %v853
          %875 = vmatpush.bf16.msra.mxu0 %v852
          %876 = vmatmul.bf16.gmra.mxu0 %v799
          %v877 = vpop.f32.mrf.mxu0
          %v878 = vadd.f32 %v818, %v877
          %v879 = vpop.f32.mrf.mxu0
          %880 = vdwg.mxu0
          %vm881 = vcmp.ge.f32.partialorder %v878, 0.0
          %v882 = vmul.f32 %v878, 0.05
          %v883 = vsel %vm881, %v878, %v882
          %v884 = vpow.pop %v883
          %v885 = vsub.f32 %v884, 1.0
          %886 = vst [vmem:[%s452] sm:$0xff] %v885
        $region96: #{tpu_custom_call.1} parent=63 // pred_fallthru
          _
        %s887 = sand.u32 %s288, 1
        %s888 = scalar_lea.sflag [#allocation8], %s887
        %s889 = sand.u32 %s288, 1
        %s890 = smul.addr %s889, 8
        %s891 = scalar_lea.vmem [#allocation14], %s890
        // Predicated region
        $region97: #{tpu_custom_call.1} parent=63 // pred_check
          %p892 = pneg %p298
        $region98: #{tpu_custom_call.1} parent=63 // pred_check_branch
          %894 = sbr.rel (%p892) target = $region100
        $region99: #{tpu_custom_call.1} parent=63 // pred_region
          %p895 = scmp.eq.s32.totalorder %s32, 2
          %s896 = scalar_select %p895, %s33, 0
          %898 = vsyncadd %s888, 0
          %s899 = smul.addr %s896, 8
          %s900 = scalar_lea.hbm %s11, %s899
          %s902 = sshll.u32 %s891, 4
          %s903 = int_to_ptr.vmem [resolvable:$true] %s902
          %s904 = sshll.u32 %s900, 4
          %s905 = int_to_ptr.hbm [resolvable:$true] %s904
          %907 = dma.vmem_to_hbm [thread:$0]  %s903, 128, %s905, %s888
        $region100: #{tpu_custom_call.1} parent=63 // pred_fallthru
          _
      $region64: #{tpu_custom_call.1} parent=5 // pred_fallthru
        _
      %p908 = scmp.le.s32.totalorder 2, %s23
      // Predicated region
      $region101: #{tpu_custom_call.1} parent=5 // pred_check
        %p909 = pneg %p908
      $region102: #{tpu_custom_call.1} parent=5 // pred_check_branch
        %911 = sbr.rel (%p909) target = $region104
      $region103: #{tpu_custom_call.1} parent=5 // pred_region
        %s912 = ssub.s32 %s23, 2
        // Predicated region
        $region105: #{tpu_custom_call.1} parent=103 // pred_check
          %p913 = pneg %p304
        $region106: #{tpu_custom_call.1} parent=103 // pred_check_branch
          %915 = sbr.rel (%p913) target = $region108
        $region107: #{tpu_custom_call.1} parent=103 // pred_region
          %s916 = sand.u32 %s289, 1
          %s917 = scalar_lea.sflag [#allocation8], %s916
          %s918 = sand.u32 %s289, 1
          %s919 = smul.addr %s918, 8
          %s920 = scalar_lea.vmem [#allocation14], %s919
          %922 = dma.done %s917, 128
        $region108: #{tpu_custom_call.1} parent=103 // pred_fallthru
          _
      $region104: #{tpu_custom_call.1} parent=5 // pred_fallthru
        _
    $region6: #{tpu_custom_call.1} parent=1 // loop_footer
      %s27 = sadd.s32 1, %s23
    $region7: #{tpu_custom_call.1} parent=1 // loop_footer_branch
      %22 = sbr.rel target = $region3
    $region8: #{tpu_custom_call.1} parent=1 // loop_exit
      _
    %923 = vsyncpa [#allocation7], 1
    %s924 = scalar_lea.sflag [#allocation7], 1
    %925 = vsyncpa %s924, 1
    %926 = vsyncpa [#allocation10], 1
    %927 = vsyncpa [#allocation13], 1
    %928 = vsyncpa [#allocation8], 1
    %s929 = scalar_lea.sflag [#allocation8], 1
    %930 = vsyncpa %s929, 1

</llo_original>
